<compile_context>
chip_gen: v7x
topology: tpu7x:2x2x1
jax: 0.10.0
libtpu: 0.0.40
codegen_flags: <defaults>
</compile_context>

<pallas_src>
import functools

import jax
import jax.numpy as jnp
from jax.experimental import pallas as pl
from jax.experimental.pallas import tpu as pltpu

INPUT_SIZE = 37    # module default
HIDDEN_SIZE = 256  # module default is 2048; kept small for the self-test
OUT_SIZE = 4


def _round_up(n: int, m: int) -> int:
    return ((n + m - 1) // m) * m


def _gelu_exact(x):
    # torch.nn.GELU() default is the exact erf-based GELU.
    inv_sqrt2 = jnp.float32(0.7071067811865476)
    return 0.5 * x * (1.0 + jax.lax.erf(x * inv_sqrt2))


def mlp_kernel(x_ref, w1_ref, b1_ref, w2_ref, b2_ref, o_ref):
    x = x_ref[...]  # [tile_b, D] f32
    h = jnp.dot(x, w1_ref[...], preferred_element_type=jnp.float32) + b1_ref[...]
    g = _gelu_exact(h)
    out = jnp.dot(g, w2_ref[...], preferred_element_type=jnp.float32) + b2_ref[...]
    o_ref[...] = jax.nn.sigmoid(out).astype(o_ref.dtype)


@functools.partial(jax.jit, static_argnames=("tile_b",))
def mlp_classification(x, w1, b1, w2, b2, *, tile_b=256):
    """x: [B, D] f32.  w1: [D, H], b1: [1, H], w2: [H, O], b2: [1, O]."""
    x = x.astype(jnp.float32)
    B, D = x.shape
    H = w1.shape[1]
    O = w2.shape[1]

    # ---- Lane-dense padding of the second layer (O=4 -> 128 lanes). ----
    O_pad = _round_up(O, 128)
    if O_pad != O:
        w2 = jnp.pad(w2, ((0, 0), (0, O_pad - O)))
        b2 = jnp.pad(b2, ((0, 0), (0, O_pad - O)))

    # ---- Batch tiling: keep tile a multiple of 8, clamp to the batch, pad tail. ----
    tile_b = _round_up(tile_b, 8)
    tile_b = min(tile_b, _round_up(B, 8))
    B_pad = _round_up(B, tile_b)
    if B_pad != B:
        x = jnp.pad(x, ((0, B_pad - B), (0, 0)))

    grid = (B_pad // tile_b,)

    cost = pl.CostEstimate(
        flops=2 * B_pad * H * (D + O_pad),
        transcendentals=B_pad * (H + O_pad),
        bytes_accessed=4 * (B_pad * D + D * H + H + H * O_pad + O_pad + B_pad * O_pad),
    )

    out = pl.pallas_call(
        mlp_kernel,
        out_shape=jax.ShapeDtypeStruct((B_pad, O_pad), jnp.float32),
        grid_spec=pltpu.PrefetchScalarGridSpec(
            num_scalar_prefetch=0,
            grid=grid,
            in_specs=[
                pl.BlockSpec((tile_b, D), lambda i: (i, 0)),   # x tile (streamed)
                pl.BlockSpec((D, H), lambda i: (0, 0)),        # W1 (VMEM-resident)
                pl.BlockSpec((1, H), lambda i: (0, 0)),        # b1 (resident)
                pl.BlockSpec((H, O_pad), lambda i: (0, 0)),    # W2, 128-lane padded (resident)
                pl.BlockSpec((1, O_pad), lambda i: (0, 0)),    # b2, padded (resident)
            ],
            out_specs=pl.BlockSpec((tile_b, O_pad), lambda i: (i, 0)),
        ),
        compiler_params=pltpu.CompilerParams(
            dimension_semantics=("parallel",),  # batch tiles shard across v7x's 2 TCs
        ),
        cost_estimate=cost,
    )(x, w1, b1, w2, b2)

    # Slice away batch padding and the lane padding of the 4-way output.
    return out[:B, :O]


def reference(x, w1, b1, w2, b2):
    h = x @ w1 + b1
    g = jax.nn.gelu(h, approximate=False)
    out = g @ w2 + b2
    return jax.nn.sigmoid(out)


if __name__ == "__main__":
    key = jax.random.PRNGKey(0)
    k_x, k_w1, k_b1, k_w2, k_b2, k_x2 = jax.random.split(key, 6)

    # Deterministic synthetic parameters (uniform, roughly nn.Linear scale).
    bound1 = 1.0 / (INPUT_SIZE ** 0.5)
    w1 = jax.random.uniform(k_w1, (INPUT_SIZE, HIDDEN_SIZE), jnp.float32, -bound1, bound1)
    b1 = jax.random.uniform(k_b1, (1, HIDDEN_SIZE), jnp.float32, -bound1, bound1)
    bound2 = 1.0 / (HIDDEN_SIZE ** 0.5)
    w2 = jax.random.uniform(k_w2, (HIDDEN_SIZE, OUT_SIZE), jnp.float32, -bound2, bound2)
    b2 = jax.random.uniform(k_b2, (1, OUT_SIZE), jnp.float32, -bound2, bound2)

    # --- Small batch (exercises the tile-clamp + tail-padding path). ---
    B = 8
    x = jax.random.normal(k_x, (B, INPUT_SIZE), dtype=jnp.float32)
    logits = mlp_classification(x, w1, b1, w2, b2)
    jax.block_until_ready(logits)
    ref = reference(x, w1, b1, w2, b2)
    assert logits.shape == (B, OUT_SIZE)
    assert jnp.allclose(logits, ref, atol=1e-5, rtol=1e-5), (
        f"max abs err = {jnp.max(jnp.abs(logits - ref))}"
    )

    # --- Ragged larger batch (multi-step grid, 3 tiles of 256, lane-dense out). ---
    B2 = 600
    x2 = jax.random.normal(k_x2, (B2, INPUT_SIZE), dtype=jnp.float32)
    logits2 = mlp_classification(x2, w1, b1, w2, b2, tile_b=256)
    jax.block_until_ready(logits2)
    ref2 = reference(x2, w1, b1, w2, b2)
    assert logits2.shape == (B2, OUT_SIZE)
    assert jnp.allclose(logits2, ref2, atol=1e-5, rtol=1e-5), (
        f"max abs err = {jnp.max(jnp.abs(logits2 - ref2))}"
    )

    print("KERNEL_OK")
</pallas_src>

<mosaic_0001>
module attributes {stable_mosaic.version = 11 : i64} {
  func.func @mlp_kernel(%arg0: i32, %arg1: memref<8x37xf32, #tpu.memory_space<vmem>>, %arg2: memref<37x256xf32, #tpu.memory_space<vmem>>, %arg3: memref<1x256xf32, #tpu.memory_space<vmem>>, %arg4: memref<256x128xf32, #tpu.memory_space<vmem>>, %arg5: memref<1x128xf32, #tpu.memory_space<vmem>>, %arg6: memref<8x128xf32, #tpu.memory_space<vmem>>) attributes {dimension_semantics = [#tpu.dimension_semantics<parallel>], iteration_bounds = array<i64: 1>, scalar_prefetch = 0 : i64, scratch_operands = 0 : i64, tpu.core_type = #tpu.core_type<tc>, window_params = [{transform_indices = @transform_0, window_bounds = array<i64: 8, 37>}, {pipeline_mode = #tpu.pipeline_mode<synchronous>, transform_indices = @transform_1, window_bounds = array<i64: 37, 256>}, {pipeline_mode = #tpu.pipeline_mode<synchronous>, transform_indices = @transform_2, window_bounds = array<i64: 1, 256>}, {pipeline_mode = #tpu.pipeline_mode<synchronous>, transform_indices = @transform_3, window_bounds = array<i64: 256, 128>}, {pipeline_mode = #tpu.pipeline_mode<synchronous>, transform_indices = @transform_4, window_bounds = array<i64: 1, 128>}, {transform_indices = @transform_5, window_bounds = array<i64: 8, 128>}]} {
    %c0 = arith.constant 0 : index
    %c0_0 = arith.constant 0 : index
    %0 = vector.load %arg1[%c0, %c0_0] : memref<8x37xf32, #tpu.memory_space<vmem>>, vector<8x37xf32>
    %c0_1 = arith.constant 0 : index
    %c0_2 = arith.constant 0 : index
    %1 = vector.load %arg2[%c0_1, %c0_2] : memref<37x256xf32, #tpu.memory_space<vmem>>, vector<37x256xf32>
    %cst = arith.constant dense<0.000000e+00> : vector<8x256xf32>
    %2 = tpu.matmul %0, %1, %cst {dimension_numbers = #tpu.dot_dimension_numbers<[1], [0], [0], [1], [0, 0, 1, 1], [], []>} : vector<8x37xf32>, vector<37x256xf32>, vector<8x256xf32> -> vector<8x256xf32>
    %c0_3 = arith.constant 0 : index
    %c0_4 = arith.constant 0 : index
    %3 = vector.load %arg3[%c0_3, %c0_4] : memref<1x256xf32, #tpu.memory_space<vmem>>, vector<1x256xf32>
    %4 = vector.broadcast %3 : vector<1x256xf32> to vector<8x256xf32>
    %5 = arith.addf %2, %4 : vector<8x256xf32>
    %cst_5 = arith.constant 5.000000e-01 : f32
    %6 = vector.broadcast %cst_5 : f32 to vector<8x256xf32>
    %7 = arith.mulf %6, %5 : vector<8x256xf32>
    %cst_6 = arith.constant 0.707106769 : f32
    %8 = vector.broadcast %cst_6 : f32 to vector<8x256xf32>
    %9 = arith.mulf %5, %8 : vector<8x256xf32>
    %10 = math.erf %9 : vector<8x256xf32>
    %cst_7 = arith.constant 1.000000e+00 : f32
    %11 = vector.broadcast %cst_7 : f32 to vector<8x256xf32>
    %12 = arith.addf %11, %10 : vector<8x256xf32>
    %13 = arith.mulf %7, %12 : vector<8x256xf32>
    %c0_8 = arith.constant 0 : index
    %c0_9 = arith.constant 0 : index
    %14 = vector.load %arg4[%c0_8, %c0_9] : memref<256x128xf32, #tpu.memory_space<vmem>>, vector<256x128xf32>
    %cst_10 = arith.constant dense<0.000000e+00> : vector<8x128xf32>
    %15 = tpu.matmul %13, %14, %cst_10 {dimension_numbers = #tpu.dot_dimension_numbers<[1], [0], [0], [1], [0, 0, 1, 1], [], []>} : vector<8x256xf32>, vector<256x128xf32>, vector<8x128xf32> -> vector<8x128xf32>
    %c0_11 = arith.constant 0 : index
    %c0_12 = arith.constant 0 : index
    %16 = vector.load %arg5[%c0_11, %c0_12] : memref<1x128xf32, #tpu.memory_space<vmem>>, vector<1x128xf32>
    %17 = vector.broadcast %16 : vector<1x128xf32> to vector<8x128xf32>
    %18 = arith.addf %15, %17 : vector<8x128xf32>
    %19 = arith.negf %18 : vector<8x128xf32>
    %20 = math.exp %19 : vector<8x128xf32>
    %cst_13 = arith.constant 1.000000e+00 : f32
    %21 = vector.broadcast %cst_13 : f32 to vector<8x128xf32>
    %22 = arith.addf %21, %20 : vector<8x128xf32>
    %23 = arith.divf %21, %22 : vector<8x128xf32>
    %c0_14 = arith.constant 0 : index
    %c0_15 = arith.constant 0 : index
    %24 = vector.load %arg6[%c0_14, %c0_15] : memref<8x128xf32, #tpu.memory_space<vmem>>, vector<8x128xf32>
    tpu.vector_store %arg6[%c0_14, %c0_15], %23 {strides = array<i32>} : memref<8x128xf32, #tpu.memory_space<vmem>>, vector<8x128xf32>,
    return
  }
  func.func @transform_0(%arg0: i32) -> (i32, i32) {
    %c0_i32 = arith.constant 0 : i32
    %c0_i32_0 = arith.constant 0 : i32
    return %arg0, %c0_i32 : i32, i32
  }
  func.func @transform_1(%arg0: i32) -> (i32, i32) {
    %c0_i32 = arith.constant 0 : i32
    %c0_i32_0 = arith.constant 0 : i32
    %c0_i32_1 = arith.constant 0 : i32
    return %c0_i32, %c0_i32_0 : i32, i32
  }
  func.func @transform_2(%arg0: i32) -> (i32, i32) {
    %c0_i32 = arith.constant 0 : i32
    %c0_i32_0 = arith.constant 0 : i32
    %c0_i32_1 = arith.constant 0 : i32
    return %c0_i32, %c0_i32_0 : i32, i32
  }
  func.func @transform_3(%arg0: i32) -> (i32, i32) {
    %c0_i32 = arith.constant 0 : i32
    %c0_i32_0 = arith.constant 0 : i32
    %c0_i32_1 = arith.constant 0 : i32
    return %c0_i32, %c0_i32_0 : i32, i32
  }
  func.func @transform_4(%arg0: i32) -> (i32, i32) {
    %c0_i32 = arith.constant 0 : i32
    %c0_i32_0 = arith.constant 0 : i32
    %c0_i32_1 = arith.constant 0 : i32
    return %c0_i32, %c0_i32_0 : i32, i32
  }
  func.func @transform_5(%arg0: i32) -> (i32, i32) {
    %c0_i32 = arith.constant 0 : i32
    %c0_i32_0 = arith.constant 0 : i32
    return %arg0, %c0_i32 : i32, i32
  }
}

</mosaic_0001>

<llo_original>
// kernel: mlp_classification.1
$region0: #{mlp_classification.1}
  #allocation0 [shape = 'u32[]', space=smem, size = 0x4, offset = 0x4, fixed_abs, tag = 'smem constant byte address 0x4 - core index']
  #allocation1 [shape = 'u32[144,128]{1,0:T(1,128)}', space=vmem, size = 0x12000, scoped, tag = 'internal scratch']
  %s0 = inlined_call_operand.vmem [shape: f32[8,37], index: 0, kind: input, shape index: {}]
  %s1 = inlined_call_operand.vmem [shape: f32[37,256], index: 1, kind: input, shape index: {}]
  %s2 = inlined_call_operand.vmem [shape: f32[1,256], index: 2, kind: input, shape index: {}]
  %s3 = inlined_call_operand.vmem [shape: f32[256,128], index: 3, kind: input, shape index: {}]
  %s4 = inlined_call_operand.vmem [shape: f32[1,128], index: 4, kind: input, shape index: {}]
  %s5 = inlined_call_operand.vmem [shape: f32[8,128], index: 5, kind: output, shape index: {}]
  %s6 = sld [smem:[#allocation0]]
  $region30: #{mlp_classification.1} parent=0
    _
  %s8 = ssub.s32 1, %s6
  %s9 = scalar_select 0, %s8, %s6
  // Predicated region
  $region2: #{mlp_classification.1} parent=0 // pred_check
    _
  $region3: #{mlp_classification.1} parent=0 // pred_check_branch
    %11 = sbr.rel (0) target = $region5
  $region4: #{mlp_classification.1} parent=0 // pred_region
    _
  $region5: #{mlp_classification.1} parent=0 // pred_fallthru
    _
  // Predicated region
  $region6: #{mlp_classification.1} parent=0 // pred_check
    _
  $region7: #{mlp_classification.1} parent=0 // pred_check_branch
    %13 = sbr.rel (0) target = $region9
  $region8: #{mlp_classification.1} parent=0 // pred_region
    _
  $region9: #{mlp_classification.1} parent=0 // pred_fallthru
    _
  // Predicated region
  $region10: #{mlp_classification.1} parent=0 // pred_check
    _
  $region11: #{mlp_classification.1} parent=0 // pred_check_branch
    %15 = sbr.rel (0) target = $region13
  $region12: #{mlp_classification.1} parent=0 // pred_region
    _
  $region13: #{mlp_classification.1} parent=0 // pred_fallthru
    _
  // Predicated region
  $region14: #{mlp_classification.1} parent=0 // pred_check
    _
  $region15: #{mlp_classification.1} parent=0 // pred_check_branch
    %17 = sbr.rel (0) target = $region17
  $region16: #{mlp_classification.1} parent=0 // pred_region
    _
  $region17: #{mlp_classification.1} parent=0 // pred_fallthru
    _
  // Predicated region
  $region18: #{mlp_classification.1} parent=0 // pred_check
    _
  $region19: #{mlp_classification.1} parent=0 // pred_check_branch
    %19 = sbr.rel (0) target = $region21
  $region20: #{mlp_classification.1} parent=0 // pred_region
    _
  $region21: #{mlp_classification.1} parent=0 // pred_fallthru
    _
  %v20 = vld [vmem:[%s0] sm:$0xff]
  %v21 = vld [vmem:[%s1] sm:$0xff]
  %v22 = vld [vmem:[%s1 + $0x8] sm:$0xff]
  %v23 = vld [vmem:[%s1 + $0x10] sm:$0xff]
  %v24 = vld [vmem:[%s1 + $0x18] sm:$0xff]
  %v25 = vld [vmem:[%s1 + $0x20] sm:$0xff]
  %v26 = vld [vmem:[%s1 + $0x28] sm:$0xff]
  %v27 = vld [vmem:[%s1 + $0x30] sm:$0xff]
  %v28 = vld [vmem:[%s1 + $0x38] sm:$0xff]
  %v29 = vld [vmem:[%s1 + $0x40] sm:$0x1f]
  %v30 = vld [vmem:[%s1 + $0x48] sm:$0x1f]
  %v31 = vld [vmem:[%s2] sm:$0x3]
  %v33 = vlaneseq
  %v34 = vshrl.u32 %v33, 7
  %v35 = vsub.s32 0, %v34
  %v36 = vrot.slane %v31, %v35
  %v37 = vlaneseq
  %v38 = vshrl.u32 %v37, 7
  %v39 = vsub.s32 1, %v38
  %v40 = vrot.slane %v31, %v39
  %vm43 = vcmask 302080
  %v45 = vsel %vm43, %v20, 0
  %vm47 = vcmask 1044480
  %v49 = vsel %vm47, %v29, 0
  %v52 = vsel %vm47, %v30, 0
  %54 = vmatprep.subr.mxu0 %v22
  %55 = vmatpush1.msra.mxu0 %v21
  %56 = vmatprep.subr.mxu0 %v24
  %57 = vmatpush1.msra.mxu0 %v23
  %58 = vmatprep.subr.mxu0 %v26
  %59 = vmatpush1.msra.mxu0 %v25
  %60 = vmatprep.subr.mxu0 %v28
  %61 = vmatpush1.msra.mxu0 %v27
  %62 = vmatprep.subr.mxu0 %v52
  %63 = vmatpush1.msra.mxu0 %v49
  %64 = vmatprep.subr.mxu0 0.0
  %65 = vmatpush1.msra.mxu0 0.0
  %66 = vmatprep.subr.mxu0 0.0
  %67 = vmatpush1.msra.mxu0 0.0
  %68 = vmatprep.subr.mxu0 0.0
  %69 = vmatpush1.msra.mxu0 0.0
  %70 = vmatprep.subr.mxu0 0.0
  %71 = vmatpush1.msra.mxu0 0.0
  %72 = vmatprep.subr.mxu0 0.0
  %73 = vmatpush1.msra.mxu0 0.0
  %74 = vmatprep.subr.mxu0 0.0
  %75 = vmatpush1.msra.mxu0 0.0
  %76 = vmatprep.subr.mxu0 0.0
  %77 = vmatpush1.msra.mxu0 0.0
  %78 = vmatprep.subr.mxu0 0.0
  %79 = vmatpush1.msra.mxu0 0.0
  %80 = vmatprep.subr.mxu0 0.0
  %81 = vmatpush1.msra.mxu0 0.0
  %82 = vmatprep.subr.mxu0 0.0
  %83 = vmatpush1.msra.mxu0 0.0
  %84 = vmatprep.subr.mxu0 0.0
  %85 = vmatpush1.msra.mxu0 0.0
  %86 = vmatprep.subr.mxu0 0.0
  %87 = vmatpush1.msra.mxu0 0.0
  %88 = vmatprep.subr.mxu0 0.0
  %89 = vmatpush1.msra.mxu0 0.0
  %90 = vmatprep.subr.mxu0 0.0
  %91 = vmatpush1.msra.mxu0 0.0
  %92 = vmatprep.subr.mxu0 0.0
  %93 = vmatpush1.msra.mxu0 0.0
  %94 = vmatprep.subr.mxu0 0.0
  %95 = vmatpush1.msra.mxu0 0.0
  %96 = vmatprep.subr.mxu0 0.0
  %97 = vmatpush1.msra.mxu0 0.0
  %98 = vmatprep.subr.mxu0 0.0
  %99 = vmatpush1.msra.mxu0 0.0
  %100 = vmatprep.subr.mxu0 0.0
  %101 = vmatpush1.msra.mxu0 0.0
  %102 = vmatprep.subr.mxu0 0.0
  %103 = vmatpush1.msra.mxu0 0.0
  %104 = vmatprep.subr.mxu0 0.0
  %105 = vmatpush1.msra.mxu0 0.0
  %106 = vmatprep.subr.mxu0 0.0
  %107 = vmatpush1.msra.mxu0 0.0
  %108 = vmatprep.subr.mxu0 0.0
  %109 = vmatpush1.msra.mxu0 0.0
  %110 = vmatprep.subr.mxu0 0.0
  %111 = vmatpush1.msra.mxu0 0.0
  %112 = vmatprep.subr.mxu0 0.0
  %113 = vmatpush1.msra.mxu0 0.0
  %114 = vmatprep.subr.mxu0 0.0
  %115 = vmatpush1.msra.mxu0 0.0
  %116 = vmatprep.subr.mxu0 0.0
  %117 = vmatpush1.msra.mxu0 0.0
  %118 = vmatprep.mubr.f32.mxu0 0.0
  %119 = vmatmul.mubr.f32.gmra.mrb[0].mxu0 %v45
  %v120 = vpop.f32.mrb[0].mxu0
  %v121 = vadd.f32 %v36, %v120
  %v122 = vpop.f32.mrb[0].mxu0
  %v123 = vadd.f32 %v40, %v122
  %124 = vdwg.mxu0
  %v125 = vmul.f32 %v121, 0.5
  %v126 = vmul.f32 %v123, 0.5
  %v127 = vmul.f32 %v121, 0.70710677
  %v128 = vmul.f32 %v123, 0.70710677
  %v129 = verf.f32.pop %v127
  %v130 = verf.f32.pop %v128
  %v131 = vadd.f32 %v129, 1.0
  %v132 = vadd.f32 %v130, 1.0
  %v133 = vmul.f32 %v125, %v131
  %v134 = vmul.f32 %v126, %v132
  %v135 = vld [vmem:[%s3] sm:$0xff]
  %v136 = vld [vmem:[%s3 + $0x8] sm:$0xff]
  %v137 = vld [vmem:[%s3 + $0x10] sm:$0xff]
  %v138 = vld [vmem:[%s3 + $0x18] sm:$0xff]
  %v139 = vld [vmem:[%s3 + $0x20] sm:$0xff]
  %v140 = vld [vmem:[%s3 + $0x28] sm:$0xff]
  %v141 = vld [vmem:[%s3 + $0x30] sm:$0xff]
  %v142 = vld [vmem:[%s3 + $0x38] sm:$0xff]
  %v143 = vld [vmem:[%s3 + $0x40] sm:$0xff]
  %v144 = vld [vmem:[%s3 + $0x48] sm:$0xff]
  %v145 = vld [vmem:[%s3 + $0x50] sm:$0xff]
  %v146 = vld [vmem:[%s3 + $0x58] sm:$0xff]
  %v147 = vld [vmem:[%s3 + $0x60] sm:$0xff]
  %v148 = vld [vmem:[%s3 + $0x68] sm:$0xff]
  %v149 = vld [vmem:[%s3 + $0x70] sm:$0xff]
  %v150 = vld [vmem:[%s3 + $0x78] sm:$0xff]
  %v151 = vld [vmem:[%s3 + $0x80] sm:$0xff]
  %v152 = vld [vmem:[%s3 + $0x88] sm:$0xff]
  %v153 = vld [vmem:[%s3 + $0x90] sm:$0xff]
  %v154 = vld [vmem:[%s3 + $0x98] sm:$0xff]
  %v155 = vld [vmem:[%s3 + $0xa0] sm:$0xff]
  %v156 = vld [vmem:[%s3 + $0xa8] sm:$0xff]
  %v157 = vld [vmem:[%s3 + $0xb0] sm:$0xff]
  %v158 = vld [vmem:[%s3 + $0xb8] sm:$0xff]
  %v159 = vld [vmem:[%s3 + $0xc0] sm:$0xff]
  %v160 = vld [vmem:[%s3 + $0xc8] sm:$0xff]
  %v161 = vld [vmem:[%s3 + $0xd0] sm:$0xff]
  %v162 = vld [vmem:[%s3 + $0xd8] sm:$0xff]
  %v163 = vld [vmem:[%s3 + $0xe0] sm:$0xff]
  %v164 = vld [vmem:[%s3 + $0xe8] sm:$0xff]
  %v165 = vld [vmem:[%s3 + $0xf0] sm:$0xff]
  %v166 = vld [vmem:[%s3 + $0xf8] sm:$0xff]
  %v167 = vld [vmem:[%s4] sm:$0x1]
  %v169 = vlaneseq
  %v170 = vshrl.u32 %v169, 7
  %v171 = vsub.s32 0, %v170
  %v172 = vrot.slane %v167, %v171
  %174 = vmatprep.subr.mxu0 0.0
  %175 = vmatpush1.msra.mxu0 %v135
  %176 = vmatprep.subr.mxu0 0.0
  %177 = vmatpush1.msra.mxu0 %v136
  %178 = vmatprep.subr.mxu0 0.0
  %179 = vmatpush1.msra.mxu0 %v137
  %180 = vmatprep.subr.mxu0 0.0
  %181 = vmatpush1.msra.mxu0 %v138
  %182 = vmatprep.subr.mxu0 0.0
  %183 = vmatpush1.msra.mxu0 %v139
  %184 = vmatprep.subr.mxu0 0.0
  %185 = vmatpush1.msra.mxu0 %v140
  %186 = vmatprep.subr.mxu0 0.0
  %187 = vmatpush1.msra.mxu0 %v141
  %188 = vmatprep.subr.mxu0 0.0
  %189 = vmatpush1.msra.mxu0 %v142
  %190 = vmatprep.subr.mxu0 0.0
  %191 = vmatpush1.msra.mxu0 %v143
  %192 = vmatprep.subr.mxu0 0.0
  %193 = vmatpush1.msra.mxu0 %v144
  %194 = vmatprep.subr.mxu0 0.0
  %195 = vmatpush1.msra.mxu0 %v145
  %196 = vmatprep.subr.mxu0 0.0
  %197 = vmatpush1.msra.mxu0 %v146
  %198 = vmatprep.subr.mxu0 0.0
  %199 = vmatpush1.msra.mxu0 %v147
  %200 = vmatprep.subr.mxu0 0.0
  %201 = vmatpush1.msra.mxu0 %v148
  %202 = vmatprep.subr.mxu0 0.0
  %203 = vmatpush1.msra.mxu0 %v149
  %204 = vmatprep.subr.mxu0 0.0
  %205 = vmatpush1.msra.mxu0 %v150
  %206 = vmatprep.subr.mxu0 0.0
  %207 = vmatpush1.msra.mxu0 %v151
  %208 = vmatprep.subr.mxu0 0.0
  %209 = vmatpush1.msra.mxu0 %v152
  %210 = vmatprep.subr.mxu0 0.0
  %211 = vmatpush1.msra.mxu0 %v153
  %212 = vmatprep.subr.mxu0 0.0
  %213 = vmatpush1.msra.mxu0 %v154
  %214 = vmatprep.subr.mxu0 0.0
  %215 = vmatpush1.msra.mxu0 %v155
  %216 = vmatprep.subr.mxu0 0.0
  %217 = vmatpush1.msra.mxu0 %v156
  %218 = vmatprep.subr.mxu0 0.0
  %219 = vmatpush1.msra.mxu0 %v157
  %220 = vmatprep.subr.mxu0 0.0
  %221 = vmatpush1.msra.mxu0 %v158
  %222 = vmatprep.subr.mxu0 0.0
  %223 = vmatpush1.msra.mxu0 %v159
  %224 = vmatprep.subr.mxu0 0.0
  %225 = vmatpush1.msra.mxu0 %v160
  %226 = vmatprep.subr.mxu0 0.0
  %227 = vmatpush1.msra.mxu0 %v161
  %228 = vmatprep.subr.mxu0 0.0
  %229 = vmatpush1.msra.mxu0 %v162
  %230 = vmatprep.subr.mxu0 0.0
  %231 = vmatpush1.msra.mxu0 %v163
  %232 = vmatprep.subr.mxu0 0.0
  %233 = vmatpush1.msra.mxu0 %v164
  %234 = vmatprep.subr.mxu0 0.0
  %235 = vmatpush1.msra.mxu0 %v165
  %236 = vmatprep.subr.mxu0 0.0
  %237 = vmatpush1.msra.mxu0 %v166
  %238 = vmatprep.mubr.f32.mxu0 %v134
  %239 = vmatmul.mubr.f32.gmra.mrb[0].mxu0 %v133
  %v240 = vpop.f32.mrb[0].mxu0
  %v241 = vadd.f32 %v172, %v240
  %v242 = vpop.f32.mrb[0].mxu0
  %243 = vdwg.mxu0
  %v244 = vxor.u32 %v241, 2147483648
  %v245 = vmul.f32 %v244, 1.442695
  %v246 = vpow.pop %v245
  %v247 = vadd.f32 %v246, 1.0
  %v248 = vrcp.pop %v247
  %v249 = vmul.f32 1.0, %v248
  %250 = vst [vmem:[%s5] sm:$0xff] %v249
  // Predicated region
  $region22: #{mlp_classification.1} parent=0 // pred_check
    _
  $region23: #{mlp_classification.1} parent=0 // pred_check_branch
    %252 = sbr.rel (0) target = $region25
  $region24: #{mlp_classification.1} parent=0 // pred_region
    _
  $region25: #{mlp_classification.1} parent=0 // pred_fallthru
    _
  // Predicated region
  $region26: #{mlp_classification.1} parent=0 // pred_check
    _
  $region27: #{mlp_classification.1} parent=0 // pred_check_branch
    %254 = sbr.rel (0) target = $region29
  $region28: #{mlp_classification.1} parent=0 // pred_region
    _
  $region29: #{mlp_classification.1} parent=0 // pred_fallthru
    _

</llo_original>
